<compile_context>
chip_gen: v5e
topology: v5e:2x2
jax: 0.10.0
libtpu: 0.0.40
codegen_flags: <defaults>
</compile_context>

<pallas_src>
import functools

import jax
import jax.numpy as jnp
from jax import lax
from jax.experimental import pallas as pl
from jax.experimental.pallas import tpu as pltpu


def _readout_kernel(p_ref, w_ref, b_ref, wc_ref, bc_ref, out_ref, *,
                    apply_sigmoid):
    """One lane-tile of fused conv3x3 + BN + ReLU + 1x1 conv (+ sigmoid).

    p_ref:   (9*C, TILE)  im2col patches; batch/spatial positions on lanes.
    w_ref:   (C, 9*C)     conv1 weights with the BN scale folded in.
    b_ref:   (C, 1)       folded BN shift (per output channel).
    wc_ref:  (1, C)       1x1 classifier weights.
    bc_ref:  (1,)  SMEM   classifier bias (scalar).
    out_ref: (1, TILE)    lane-dense logits / probabilities.
    """
    # Single im2col matmul for the 3x3 conv (BN scale already folded in).
    acc = jnp.dot(w_ref[...], p_ref[...], preferred_element_type=jnp.float32)
    # BN shift + ReLU, full lane width.
    fm = jnp.maximum(acc + b_ref[...], 0.0)
    # 1x1 classifier conv: (1, C) x (C, TILE) matmul + scalar bias (SMEM).
    logit = jnp.dot(wc_ref[...], fm, preferred_element_type=jnp.float32)
    logit = logit + bc_ref[0]
    if apply_sigmoid:
        logit = jax.nn.sigmoid(logit)
    out_ref[...] = logit.astype(out_ref.dtype)


def readout_simple_forward(image_feats, node_out, params, original_img_size):
    del image_feats  # unused, mirroring the PyTorch forward
    N, C, H, W = node_out.shape
    eps = 1e-5
    T = N * H * W  # all batch/spatial positions, flattened onto lanes

    # --- wrapper-side layout plumbing (plain XLA, tiny arrays) -------------
    # Zero-pad spatial dims (conv padding=1) and build im2col patches of
    # shape (9*C, N*H*W): row (k*C + c) holds channel c shifted by tap k.
    # TODO(synk): for large H*W*C the 9x patch expansion should move inside
    # the kernel (pltpu.roll on a padded-flat layout) or be fused via
    # CompilerParams(allow_input_fusion) to avoid the extra HBM pass.
    x = node_out.astype(jnp.float32)
    xpad = jnp.pad(x, ((0, 0), (0, 0), (1, 1), (1, 1)))
    patches = jnp.stack(
        [xpad[:, :, dy:dy + H, dx:dx + W]
         for dy in range(3) for dx in range(3)], axis=0)      # (9, N, C, H, W)
    patches = patches.transpose(0, 2, 1, 3, 4).reshape(9 * C, T)

    # conv1 weights (Cout, Cin, 3, 3) -> (Cout, 9*Cin), tap-major columns,
    # with eval-mode BatchNorm scale folded in; BN shift becomes a bias.
    scale = params["bn_gamma"] / jnp.sqrt(params["bn_var"] + eps)
    shift = params["bn_beta"] - params["bn_mean"] * scale
    w_mat = jnp.transpose(params["conv1_w"], (0, 2, 3, 1)).reshape(C, 9 * C)
    w_mat = (w_mat * scale[:, None]).astype(jnp.float32)
    b_col = shift.reshape(C, 1).astype(jnp.float32)

    # 1x1 classifier conv: weight (1, C, 1, 1) -> (1, C); bias -> SMEM scalar.
    wc = params["cls_w"].reshape(1, C).astype(jnp.float32)
    bc = params["cls_b"].reshape(1).astype(jnp.float32)

    # Lane tiling: one grid step per lane tile; weights stay resident.
    tile = T
    for cand in (4096, 2048, 1024, 512, 256, 128):
        if T % cand == 0:
            tile = cand
            break
    grid = (T // tile,)

    needs_resize = (H, W) != tuple(original_img_size)
    kernel = functools.partial(_readout_kernel,
                               apply_sigmoid=not needs_resize)

    out = pl.pallas_call(
        kernel,
        out_shape=jax.ShapeDtypeStruct((1, T), jnp.float32),
        grid=grid,
        in_specs=[
            pl.BlockSpec((9 * C, tile), lambda i: (0, i)),
            pl.BlockSpec((C, 9 * C), lambda i: (0, 0)),
            pl.BlockSpec((C, 1), lambda i: (0, 0)),
            pl.BlockSpec((1, C), lambda i: (0, 0)),
            pl.BlockSpec(memory_space=pltpu.MemorySpace.SMEM),
        ],
        out_specs=pl.BlockSpec((1, tile), lambda i: (0, i)),
        compiler_params=pltpu.CompilerParams(
            dimension_semantics=("parallel",)),
    )(patches, w_mat, b_col, wc, bc)

    x1 = out.reshape(N, H, W)[:, None, :, :]  # back to NCHW, single channel

    if needs_resize:
        # F.interpolate(mode='bilinear') defaults: align_corners=False
        # (half-pixel centers) and no antialias -> antialias=False here.
        x1 = jax.image.resize(
            x1, (N, 1, original_img_size[0], original_img_size[1]),
            method="bilinear", antialias=False)
        x1 = jax.nn.sigmoid(x1)  # PyTorch applies sigmoid AFTER interpolate
    return x1


def readout_simple_reference(node_out, params, eps=1e-5):
    """Pure-JAX reference matching the PyTorch forward (no-resize case)."""
    y = lax.conv_general_dilated(
        node_out, params["conv1_w"], window_strides=(1, 1),
        padding=((1, 1), (1, 1)), dimension_numbers=("NCHW", "OIHW", "NCHW"))
    scale = params["bn_gamma"] / jnp.sqrt(params["bn_var"] + eps)
    shift = params["bn_beta"] - params["bn_mean"] * scale
    y = y * scale[None, :, None, None] + shift[None, :, None, None]
    y = jnp.maximum(y, 0.0)
    z = lax.conv_general_dilated(
        y, params["cls_w"], window_strides=(1, 1),
        padding=((0, 0), (0, 0)), dimension_numbers=("NCHW", "OIHW", "NCHW"))
    z = z + params["cls_b"][None, :, None, None]
    return jax.nn.sigmoid(z)


if __name__ == "__main__":
    key = jax.random.PRNGKey(0)
    N, C_feats, C_graph, H, W = 2, 8, 4, 16, 16
    original_img_size = (16, 16)

    k1, k2, k3, k4 = jax.random.split(key, 4)
    image_feats = jax.random.normal(k1, (N, C_feats, H, W), jnp.float32)
    node_out = jax.random.normal(k2, (N, C_graph, H, W), jnp.float32)

    params = {
        "conv1_w": 0.1 * jax.random.normal(k3, (C_graph, C_graph, 3, 3),
                                           jnp.float32),
        "bn_gamma": 1.0 + 0.1 * jnp.arange(C_graph, dtype=jnp.float32),
        "bn_beta": 0.05 * jnp.arange(C_graph, dtype=jnp.float32),
        "bn_mean": 0.01 * jnp.arange(C_graph, dtype=jnp.float32),
        "bn_var": 1.0 + 0.02 * jnp.arange(C_graph, dtype=jnp.float32),
        "cls_w": 0.1 * jax.random.normal(k4, (1, C_graph, 1, 1), jnp.float32),
        "cls_b": jnp.array([0.1], dtype=jnp.float32),
    }

    out = readout_simple_forward(image_feats, node_out, params,
                                 original_img_size)
    out = jax.block_until_ready(out)

    ref = readout_simple_reference(node_out, params)
    assert out.shape == (N, 1, H, W), out.shape
    assert jnp.allclose(out, ref, atol=1e-4, rtol=1e-4), \
        float(jnp.max(jnp.abs(out - ref)))
    print("KERNEL_OK")
</pallas_src>

<mosaic_0001>
module attributes {stable_mosaic.version = 11 : i64} {
  func.func @_readout_kernel(%arg0: i32, %arg1: memref<36x512xf32, #tpu.memory_space<vmem>>, %arg2: memref<4x36xf32, #tpu.memory_space<vmem>>, %arg3: memref<4x1xf32, #tpu.memory_space<vmem>>, %arg4: memref<1x4xf32, #tpu.memory_space<vmem>>, %arg5: memref<1xf32, #tpu.memory_space<smem>>, %arg6: memref<1x512xf32, #tpu.memory_space<vmem>>) attributes {dimension_semantics = [#tpu.dimension_semantics<parallel>], iteration_bounds = array<i64: 1>, scalar_prefetch = 0 : i64, scratch_operands = 0 : i64, tpu.core_type = #tpu.core_type<tc>, window_params = [{transform_indices = @transform_0, window_bounds = array<i64: 36, 512>}, {pipeline_mode = #tpu.pipeline_mode<synchronous>, transform_indices = @transform_1, window_bounds = array<i64: 4, 36>}, {pipeline_mode = #tpu.pipeline_mode<synchronous>, transform_indices = @transform_2, window_bounds = array<i64: 4, 1>}, {pipeline_mode = #tpu.pipeline_mode<synchronous>, transform_indices = @transform_3, window_bounds = array<i64: 1, 4>}, {transform_indices = @transform_4, window_bounds = array<i64: 1>}, {transform_indices = @transform_5, window_bounds = array<i64: 1, 512>}]} {
    %c0 = arith.constant 0 : index
    %c0_0 = arith.constant 0 : index
    %0 = vector.load %arg2[%c0, %c0_0] : memref<4x36xf32, #tpu.memory_space<vmem>>, vector<4x36xf32>
    %c0_1 = arith.constant 0 : index
    %c0_2 = arith.constant 0 : index
    %1 = vector.load %arg1[%c0_1, %c0_2] : memref<36x512xf32, #tpu.memory_space<vmem>>, vector<36x512xf32>
    %cst = arith.constant dense<0.000000e+00> : vector<4x512xf32>
    %2 = tpu.matmul %0, %1, %cst {dimension_numbers = #tpu.dot_dimension_numbers<[1], [0], [0], [1], [0, 0, 1, 1], [], []>} : vector<4x36xf32>, vector<36x512xf32>, vector<4x512xf32> -> vector<4x512xf32>
    %c0_3 = arith.constant 0 : index
    %c0_4 = arith.constant 0 : index
    %3 = vector.load %arg3[%c0_3, %c0_4] : memref<4x1xf32, #tpu.memory_space<vmem>>, vector<4x1xf32>
    %4 = vector.broadcast %3 : vector<4x1xf32> to vector<4x512xf32>
    %5 = arith.addf %2, %4 : vector<4x512xf32>
    %cst_5 = arith.constant 0.000000e+00 : f32
    %6 = vector.broadcast %cst_5 : f32 to vector<4x512xf32>
    %7 = arith.maximumf %5, %6 : vector<4x512xf32>
    %c0_6 = arith.constant 0 : index
    %c0_7 = arith.constant 0 : index
    %8 = vector.load %arg4[%c0_6, %c0_7] : memref<1x4xf32, #tpu.memory_space<vmem>>, vector<1x4xf32>
    %cst_8 = arith.constant dense<0.000000e+00> : vector<1x512xf32>
    %9 = tpu.matmul %8, %7, %cst_8 {dimension_numbers = #tpu.dot_dimension_numbers<[1], [0], [0], [1], [0, 0, 1, 1], [], []>} : vector<1x4xf32>, vector<4x512xf32>, vector<1x512xf32> -> vector<1x512xf32>
    %c0_9 = arith.constant 0 : index
    %10 = memref.load %arg5[%c0_9] : memref<1xf32, #tpu.memory_space<smem>>
    %11 = vector.broadcast %10 : f32 to vector<1x512xf32>
    %12 = arith.addf %9, %11 : vector<1x512xf32>
    %13 = arith.negf %12 : vector<1x512xf32>
    %14 = math.exp %13 : vector<1x512xf32>
    %cst_10 = arith.constant 1.000000e+00 : f32
    %15 = vector.broadcast %cst_10 : f32 to vector<1x512xf32>
    %16 = arith.addf %15, %14 : vector<1x512xf32>
    %17 = arith.divf %15, %16 : vector<1x512xf32>
    %c0_11 = arith.constant 0 : index
    %c0_12 = arith.constant 0 : index
    %18 = vector.load %arg6[%c0_11, %c0_12] : memref<1x512xf32, #tpu.memory_space<vmem>>, vector<1x512xf32>
    tpu.vector_store %arg6[%c0_11, %c0_12], %17 {strides = array<i32>} : memref<1x512xf32, #tpu.memory_space<vmem>>, vector<1x512xf32>,
    return
  }
  func.func @transform_0(%arg0: i32) -> (i32, i32) {
    %c0_i32 = arith.constant 0 : i32
    %c0_i32_0 = arith.constant 0 : i32
    return %c0_i32, %arg0 : i32, i32
  }
  func.func @transform_1(%arg0: i32) -> (i32, i32) {
    %c0_i32 = arith.constant 0 : i32
    %c0_i32_0 = arith.constant 0 : i32
    %c0_i32_1 = arith.constant 0 : i32
    return %c0_i32, %c0_i32_0 : i32, i32
  }
  func.func @transform_2(%arg0: i32) -> (i32, i32) {
    %c0_i32 = arith.constant 0 : i32
    %c0_i32_0 = arith.constant 0 : i32
    %c0_i32_1 = arith.constant 0 : i32
    return %c0_i32, %c0_i32_0 : i32, i32
  }
  func.func @transform_3(%arg0: i32) -> (i32, i32) {
    %c0_i32 = arith.constant 0 : i32
    %c0_i32_0 = arith.constant 0 : i32
    %c0_i32_1 = arith.constant 0 : i32
    return %c0_i32, %c0_i32_0 : i32, i32
  }
  func.func @transform_4(%arg0: i32) -> i32 {
    %c0_i32 = arith.constant 0 : i32
    %c0_i32_0 = arith.constant 0 : i32
    return %c0_i32 : i32
  }
  func.func @transform_5(%arg0: i32) -> (i32, i32) {
    %c0_i32 = arith.constant 0 : i32
    %c0_i32_0 = arith.constant 0 : i32
    return %c0_i32, %arg0 : i32, i32
  }
}

</mosaic_0001>

<llo_original>
// kernel: tpu_custom_call.1
$region0: #{tpu_custom_call.1}
  #allocation0 [shape = 'u32[]', space=smem, size = 0x4, offset = 0x4, fixed_abs, tag = 'smem constant byte address 0x4 - core index']
  #allocation1 [shape = 'u32[72,128]{1,0:T(1,128)}', space=vmem, size = 0x9000, scoped, tag = 'internal scratch']
  #allocation2 [shape = 'f32[1]{0:T(128)S(6)}', space=smem, size = 0x200, scoped, tag = 'scoped memory for tpu_custom_call.1']
  %s0 = inlined_call_operand.hbm [shape: f32[36,512], index: 0, kind: input, shape index: {}]
  %s1 = inlined_call_operand.vmem [shape: f32[4,36], index: 1, kind: input, shape index: {}]
  %s2 = inlined_call_operand.vmem [shape: f32[4,1], index: 2, kind: input, shape index: {}]
  %s3 = inlined_call_operand.vmem [shape: f32[1,4], index: 3, kind: input, shape index: {}]
  %s4 = inlined_call_operand.<no memory space> [shape: f32[1], index: 4, kind: input, shape index: {}]
  %s5 = inlined_call_operand.hbm [shape: f32[1,512], index: 5, kind: output, shape index: {}]
  %s6 = sld [smem:[#allocation0]]
  $region34: #{tpu_custom_call.1} parent=0
    _
  %s8 = ssub.s32 1, %s6
  %s9 = scalar_select 0, %s8, %s6
  %10 = sst [smem:[#allocation2]] %s4
  $region1: #{tpu_custom_call.1} parent=0
    #allocation3 [shape = 'u8[81920]{0}', space=vmem, size = 0x14000, scoped, tag = 'input window, operand 0, single buffered']
    #allocation4 [shape = 's32[1]{0}', space=sflag, size = 0x4, scoped, tag = 'scoped memory for tpu_custom_call.1']
    #allocation5 [shape = 's32[1]{0}', space=sflag, size = 0x4, scoped, tag = 'scoped memory for tpu_custom_call.1']
    #allocation6 [shape = 'u8[2048]{0}', space=vmem, size = 0x800, scoped, tag = 'output window, operand 0, single buffered']
    %11 = vsyncpa [#allocation4], 0
    %12 = vsyncpa [#allocation5], 0
    // Predicated region
    $region2: #{tpu_custom_call.1} parent=1 // pred_check
      _
    $region3: #{tpu_custom_call.1} parent=1 // pred_check_branch
      %14 = sbr.rel (0) target = $region5
    $region4: #{tpu_custom_call.1} parent=1 // pred_region
      %16 = vsyncadd [#allocation4], 0
      %s17 = sshll.u32 %s0, 4
      %s18 = int_to_ptr.hbm [resolvable:$true] %s17
      %s19 = sshll.u32 [#allocation3], 4
      %s20 = int_to_ptr.vmem [resolvable:$true] %s19
      %25 = dma.hbm_to_vmem [thread:$0]  %s18, 2560, %s20, [#allocation4], 512, 512, 32
    $region5: #{tpu_custom_call.1} parent=1 // pred_fallthru
      _
    // Predicated region
    $region6: #{tpu_custom_call.1} parent=1 // pred_check
      _
    $region7: #{tpu_custom_call.1} parent=1 // pred_check_branch
      %27 = sbr.rel (0) target = $region9
    $region8: #{tpu_custom_call.1} parent=1 // pred_region
      _
    $region9: #{tpu_custom_call.1} parent=1 // pred_fallthru
      _
    // Predicated region
    $region10: #{tpu_custom_call.1} parent=1 // pred_check
      _
    $region11: #{tpu_custom_call.1} parent=1 // pred_check_branch
      %29 = sbr.rel (0) target = $region13
    $region12: #{tpu_custom_call.1} parent=1 // pred_region
      _
    $region13: #{tpu_custom_call.1} parent=1 // pred_fallthru
      _
    // Predicated region
    $region14: #{tpu_custom_call.1} parent=1 // pred_check
      _
    $region15: #{tpu_custom_call.1} parent=1 // pred_check_branch
      %31 = sbr.rel (0) target = $region17
    $region16: #{tpu_custom_call.1} parent=1 // pred_region
      _
    $region17: #{tpu_custom_call.1} parent=1 // pred_fallthru
      _
    // Predicated region
    $region18: #{tpu_custom_call.1} parent=1 // pred_check
      _
    $region19: #{tpu_custom_call.1} parent=1 // pred_check_branch
      %33 = sbr.rel (0) target = $region21
    $region20: #{tpu_custom_call.1} parent=1 // pred_region
      _
    $region21: #{tpu_custom_call.1} parent=1 // pred_fallthru
      _
    // Predicated region
    $region22: #{tpu_custom_call.1} parent=1 // pred_check
      _
    $region23: #{tpu_custom_call.1} parent=1 // pred_check_branch
      %35 = sbr.rel (0) target = $region25
    $region24: #{tpu_custom_call.1} parent=1 // pred_region
      %37 = dma.done [#allocation4], 2560
    $region25: #{tpu_custom_call.1} parent=1 // pred_fallthru
      _
    %v38 = vld [vmem:[%s1] sm:$0xf]
    %v39 = vld [vmem:[#allocation3] sm:$0xff]
    %v40 = vld [vmem:[#allocation3 + $0x8] sm:$0xff]
    %v41 = vld [vmem:[#allocation3 + $0x10] sm:$0xff]
    %v42 = vld [vmem:[#allocation3 + $0x18] sm:$0xff]
    %v43 = vld [vmem:[#allocation3 + $0x20] sm:$0xff]
    %v44 = vld [vmem:[#allocation3 + $0x28] sm:$0xff]
    %v45 = vld [vmem:[#allocation3 + $0x30] sm:$0xff]
    %v46 = vld [vmem:[#allocation3 + $0x38] sm:$0xff]
    %v47 = vld [vmem:[#allocation3 + $0x40] sm:$0xff]
    %v48 = vld [vmem:[#allocation3 + $0x48] sm:$0xff]
    %v49 = vld [vmem:[#allocation3 + $0x50] sm:$0xff]
    %v50 = vld [vmem:[#allocation3 + $0x58] sm:$0xff]
    %v51 = vld [vmem:[#allocation3 + $0x60] sm:$0xff]
    %v52 = vld [vmem:[#allocation3 + $0x68] sm:$0xff]
    %v53 = vld [vmem:[#allocation3 + $0x70] sm:$0xff]
    %v54 = vld [vmem:[#allocation3 + $0x78] sm:$0xff]
    %v55 = vld [vmem:[#allocation3 + $0x80] sm:$0xf]
    %v56 = vld [vmem:[#allocation3 + $0x88] sm:$0xf]
    %v57 = vld [vmem:[#allocation3 + $0x90] sm:$0xf]
    %v58 = vld [vmem:[#allocation3 + $0x98] sm:$0xf]
    %v59 = vld [vmem:[%s2] sm:$0xf]
    %61 = vset.pattern.permute.xlu0 0
    %62 = vperm.xlu0 %61, %v59
    %v63 = vpop.permute.xlu0 %62
    %vm65 = vcmask 293888
    %v67 = vsel %vm65, %v38, 0
    %vm69 = vcmask 1043456
    %v71 = vsel %vm69, %v55, 0
    %v74 = vsel %vm69, %v56, 0
    %v77 = vsel %vm69, %v57, 0
    %v80 = vsel %vm69, %v58, 0
    %82 = vmatpush.msra.mxu0 0.0
    %83 = vmatpush.msra.mxu0 0.0
    %84 = vmatpush.msra.mxu0 0.0
    %85 = vmatpush.msra.mxu0 0.0
    %86 = vmatpush.msra.mxu0 0.0
    %87 = vmatpush.msra.mxu0 0.0
    %88 = vmatpush.msra.mxu0 0.0
    %89 = vmatpush.msra.mxu0 0.0
    %90 = vmatpush.msra.mxu0 0.0
    %91 = vmatpush.msra.mxu0 0.0
    %92 = vmatpush.msra.mxu0 0.0
    %93 = vmatpush.msra.mxu0 %v71
    %94 = vmatpush.msra.mxu0 %v51
    %95 = vmatpush.msra.mxu0 %v47
    %96 = vmatpush.msra.mxu0 %v43
    %97 = vmatpush.msra.mxu0 %v39
    %98 = vmatmul.f32.gmra.mxu0 %v67
    %v99 = vpop.f32.mrf.mxu0
    %v100 = vadd.f32 %v63, %v99
    %101 = vdwg.mxu0
    %102 = vmatpush.msra.mxu0 0.0
    %103 = vmatpush.msra.mxu0 0.0
    %104 = vmatpush.msra.mxu0 0.0
    %105 = vmatpush.msra.mxu0 0.0
    %106 = vmatpush.msra.mxu0 0.0
    %107 = vmatpush.msra.mxu0 0.0
    %108 = vmatpush.msra.mxu0 0.0
    %109 = vmatpush.msra.mxu0 0.0
    %110 = vmatpush.msra.mxu0 0.0
    %111 = vmatpush.msra.mxu0 0.0
    %112 = vmatpush.msra.mxu0 0.0
    %113 = vmatpush.msra.mxu0 %v74
    %114 = vmatpush.msra.mxu0 %v52
    %115 = vmatpush.msra.mxu0 %v48
    %116 = vmatpush.msra.mxu0 %v44
    %117 = vmatpush.msra.mxu0 %v40
    %118 = vmatmul.f32.gmra.mxu0 %v67
    %v119 = vpop.f32.mrf.mxu0
    %v120 = vadd.f32 %v63, %v119
    %121 = vdwg.mxu0
    %122 = vmatpush.msra.mxu0 0.0
    %123 = vmatpush.msra.mxu0 0.0
    %124 = vmatpush.msra.mxu0 0.0
    %125 = vmatpush.msra.mxu0 0.0
    %126 = vmatpush.msra.mxu0 0.0
    %127 = vmatpush.msra.mxu0 0.0
    %128 = vmatpush.msra.mxu0 0.0
    %129 = vmatpush.msra.mxu0 0.0
    %130 = vmatpush.msra.mxu0 0.0
    %131 = vmatpush.msra.mxu0 0.0
    %132 = vmatpush.msra.mxu0 0.0
    %133 = vmatpush.msra.mxu0 %v77
    %134 = vmatpush.msra.mxu0 %v53
    %135 = vmatpush.msra.mxu0 %v49
    %136 = vmatpush.msra.mxu0 %v45
    %137 = vmatpush.msra.mxu0 %v41
    %138 = vmatmul.f32.gmra.mxu0 %v67
    %v139 = vpop.f32.mrf.mxu0
    %v140 = vadd.f32 %v63, %v139
    %141 = vdwg.mxu0
    %142 = vmatpush.msra.mxu0 0.0
    %143 = vmatpush.msra.mxu0 0.0
    %144 = vmatpush.msra.mxu0 0.0
    %145 = vmatpush.msra.mxu0 0.0
    %146 = vmatpush.msra.mxu0 0.0
    %147 = vmatpush.msra.mxu0 0.0
    %148 = vmatpush.msra.mxu0 0.0
    %149 = vmatpush.msra.mxu0 0.0
    %150 = vmatpush.msra.mxu0 0.0
    %151 = vmatpush.msra.mxu0 0.0
    %152 = vmatpush.msra.mxu0 0.0
    %153 = vmatpush.msra.mxu0 %v80
    %154 = vmatpush.msra.mxu0 %v54
    %155 = vmatpush.msra.mxu0 %v50
    %156 = vmatpush.msra.mxu0 %v46
    %157 = vmatpush.msra.mxu0 %v42
    %158 = vmatmul.f32.gmra.mxu0 %v67
    %v159 = vpop.f32.mrf.mxu0
    %v160 = vadd.f32 %v63, %v159
    %161 = vdwg.mxu0
    %v162 = vmax.f32 %v100, 0.0
    %v163 = vmax.f32 %v120, 0.0
    %v164 = vmax.f32 %v140, 0.0
    %v165 = vmax.f32 %v160, 0.0
    %v166 = vld [vmem:[%s3] sm:$0x1]
    %s167 = sld [smem:[#allocation2]]
    %v168 = vstv %s167
    %vm169 = vcmask 31744
    %v171 = vsel %vm169, %v166, 0
    %v174 = vsel %vm69, %v162, 0
    %v177 = vsel %vm69, %v163, 0
    %v180 = vsel %vm69, %v164, 0
    %v183 = vsel %vm69, %v165, 0
    %185 = vmatpush.msra.mxu0 0.0
    %186 = vmatpush.msra.mxu0 0.0
    %187 = vmatpush.msra.mxu0 0.0
    %188 = vmatpush.msra.mxu0 0.0
    %189 = vmatpush.msra.mxu0 0.0
    %190 = vmatpush.msra.mxu0 0.0
    %191 = vmatpush.msra.mxu0 0.0
    %192 = vmatpush.msra.mxu0 0.0
    %193 = vmatpush.msra.mxu0 0.0
    %194 = vmatpush.msra.mxu0 0.0
    %195 = vmatpush.msra.mxu0 0.0
    %196 = vmatpush.msra.mxu0 0.0
    %197 = vmatpush.msra.mxu0 0.0
    %198 = vmatpush.msra.mxu0 0.0
    %199 = vmatpush.msra.mxu0 0.0
    %200 = vmatpush.msra.mxu0 %v174
    %201 = vmatmul.f32.gmra.mxu0 %v171
    %v202 = vpop.f32.mrf.mxu0
    %v203 = vadd.f32 %v168, %v202
    %204 = vdwg.mxu0
    %205 = vmatpush.msra.mxu0 0.0
    %206 = vmatpush.msra.mxu0 0.0
    %207 = vmatpush.msra.mxu0 0.0
    %208 = vmatpush.msra.mxu0 0.0
    %209 = vmatpush.msra.mxu0 0.0
    %210 = vmatpush.msra.mxu0 0.0
    %211 = vmatpush.msra.mxu0 0.0
    %212 = vmatpush.msra.mxu0 0.0
    %213 = vmatpush.msra.mxu0 0.0
    %214 = vmatpush.msra.mxu0 0.0
    %215 = vmatpush.msra.mxu0 0.0
    %216 = vmatpush.msra.mxu0 0.0
    %217 = vmatpush.msra.mxu0 0.0
    %218 = vmatpush.msra.mxu0 0.0
    %219 = vmatpush.msra.mxu0 0.0
    %220 = vmatpush.msra.mxu0 %v177
    %221 = vmatmul.f32.gmra.mxu0 %v171
    %v222 = vpop.f32.mrf.mxu0
    %v223 = vadd.f32 %v168, %v222
    %224 = vdwg.mxu0
    %225 = vmatpush.msra.mxu0 0.0
    %226 = vmatpush.msra.mxu0 0.0
    %227 = vmatpush.msra.mxu0 0.0
    %228 = vmatpush.msra.mxu0 0.0
    %229 = vmatpush.msra.mxu0 0.0
    %230 = vmatpush.msra.mxu0 0.0
    %231 = vmatpush.msra.mxu0 0.0
    %232 = vmatpush.msra.mxu0 0.0
    %233 = vmatpush.msra.mxu0 0.0
    %234 = vmatpush.msra.mxu0 0.0
    %235 = vmatpush.msra.mxu0 0.0
    %236 = vmatpush.msra.mxu0 0.0
    %237 = vmatpush.msra.mxu0 0.0
    %238 = vmatpush.msra.mxu0 0.0
    %239 = vmatpush.msra.mxu0 0.0
    %240 = vmatpush.msra.mxu0 %v180
    %241 = vmatmul.f32.gmra.mxu0 %v171
    %v242 = vpop.f32.mrf.mxu0
    %v243 = vadd.f32 %v168, %v242
    %244 = vdwg.mxu0
    %245 = vmatpush.msra.mxu0 0.0
    %246 = vmatpush.msra.mxu0 0.0
    %247 = vmatpush.msra.mxu0 0.0
    %248 = vmatpush.msra.mxu0 0.0
    %249 = vmatpush.msra.mxu0 0.0
    %250 = vmatpush.msra.mxu0 0.0
    %251 = vmatpush.msra.mxu0 0.0
    %252 = vmatpush.msra.mxu0 0.0
    %253 = vmatpush.msra.mxu0 0.0
    %254 = vmatpush.msra.mxu0 0.0
    %255 = vmatpush.msra.mxu0 0.0
    %256 = vmatpush.msra.mxu0 0.0
    %257 = vmatpush.msra.mxu0 0.0
    %258 = vmatpush.msra.mxu0 0.0
    %259 = vmatpush.msra.mxu0 0.0
    %260 = vmatpush.msra.mxu0 %v183
    %261 = vmatmul.f32.gmra.mxu0 %v171
    %v262 = vpop.f32.mrf.mxu0
    %v263 = vadd.f32 %v168, %v262
    %264 = vdwg.mxu0
    %v265 = vxor.u32 %v203, 2147483648
    %v266 = vxor.u32 %v223, 2147483648
    %v267 = vxor.u32 %v243, 2147483648
    %v268 = vxor.u32 %v263, 2147483648
    %v269 = vmul.f32 %v265, 1.442695
    %v270 = vpow.pop %v269
    %v271 = vmul.f32 %v266, 1.442695
    %v272 = vpow.pop %v271
    %v273 = vmul.f32 %v267, 1.442695
    %v274 = vpow.pop %v273
    %v275 = vmul.f32 %v268, 1.442695
    %v276 = vpow.pop %v275
    %v277 = vadd.f32 %v270, 1.0
    %v278 = vadd.f32 %v272, 1.0
    %v279 = vadd.f32 %v274, 1.0
    %v280 = vadd.f32 %v276, 1.0
    %v281 = vrcp.pop %v277
    %v282 = vmul.f32 %v277, %v281
    %v283 = vsub.f32 1.0, %v282
    %v284 = vmul.f32 %v281, %v283
    %v285 = vadd.f32 %v281, %v284
    %vm286 = vweird.f32 %v277
    %vm287 = vweird.f32 %v281
    %vm288 = vmor %vm286, %vm287
    %v289 = vsel %vm288, %v281, %v285
    %v290 = vand.u32 2147483647, %v277
    %vm291 = vcmp.eq.f32.partialorder %v290, 8.507059e+37
    %v292 = vand.u32 %v277, 2147483648
    %v293 = vor.u32 1.1754944e-38, %v292
    %v294 = vsel %vm291, %v293, %v289
    %v295 = vmul.f32 1.0, %v294
    %v296 = vrcp.pop %v278
    %v297 = vmul.f32 %v278, %v296
    %v298 = vsub.f32 1.0, %v297
    %v299 = vmul.f32 %v296, %v298
    %v300 = vadd.f32 %v296, %v299
    %vm301 = vweird.f32 %v278
    %vm302 = vweird.f32 %v296
    %vm303 = vmor %vm301, %vm302
    %v304 = vsel %vm303, %v296, %v300
    %v305 = vand.u32 2147483647, %v278
    %vm306 = vcmp.eq.f32.partialorder %v305, 8.507059e+37
    %v307 = vand.u32 %v278, 2147483648
    %v308 = vor.u32 1.1754944e-38, %v307
    %v309 = vsel %vm306, %v308, %v304
    %v310 = vmul.f32 1.0, %v309
    %v311 = vrcp.pop %v279
    %v312 = vmul.f32 %v279, %v311
    %v313 = vsub.f32 1.0, %v312
    %v314 = vmul.f32 %v311, %v313
    %v315 = vadd.f32 %v311, %v314
    %vm316 = vweird.f32 %v279
    %vm317 = vweird.f32 %v311
    %vm318 = vmor %vm316, %vm317
    %v319 = vsel %vm318, %v311, %v315
    %v320 = vand.u32 2147483647, %v279
    %vm321 = vcmp.eq.f32.partialorder %v320, 8.507059e+37
    %v322 = vand.u32 %v279, 2147483648
    %v323 = vor.u32 1.1754944e-38, %v322
    %v324 = vsel %vm321, %v323, %v319
    %v325 = vmul.f32 1.0, %v324
    %v326 = vrcp.pop %v280
    %v327 = vmul.f32 %v280, %v326
    %v328 = vsub.f32 1.0, %v327
    %v329 = vmul.f32 %v326, %v328
    %v330 = vadd.f32 %v326, %v329
    %vm331 = vweird.f32 %v280
    %vm332 = vweird.f32 %v326
    %vm333 = vmor %vm331, %vm332
    %v334 = vsel %vm333, %v326, %v330
    %v335 = vand.u32 2147483647, %v280
    %vm336 = vcmp.eq.f32.partialorder %v335, 8.507059e+37
    %v337 = vand.u32 %v280, 2147483648
    %v338 = vor.u32 1.1754944e-38, %v337
    %v339 = vsel %vm336, %v338, %v334
    %v340 = vmul.f32 1.0, %v339
    %v345 = vrot.slane %v310, 7
    %v346 = vrot.slane %v325, 6
    %v347 = vrot.slane %v340, 5
    %vm348 = vcmask 1040384
    %v349 = vsel %vm348, %v295, %v345
    %vm350 = vcmask 1042434
    %v351 = vsel %vm350, %v346, %v347
    %vm352 = vcmask 1041408
    %v353 = vsel %vm352, %v349, %v351
    %v355 = vlaneseq
    %vm356 = vcmp.ge.s32.totalorder %v355, 0
    %vm357 = vcmp.lt.s32.totalorder %v355, 512
    %vm358 = vmand %vm356, %vm357
    %359 = vst.msk [vmem:[#allocation6] sm:$0xf] %vm358, %v353
    // Predicated region
    $region26: #{tpu_custom_call.1} parent=1 // pred_check
      _
    $region27: #{tpu_custom_call.1} parent=1 // pred_check_branch
      %361 = sbr.rel (0) target = $region29
    $region28: #{tpu_custom_call.1} parent=1 // pred_region
      %363 = vsyncadd [#allocation5], 0
      %s365 = sshll.u32 [#allocation6], 4
      %s366 = int_to_ptr.vmem [resolvable:$true] %s365
      %s367 = sshll.u32 %s5, 4
      %s368 = int_to_ptr.hbm [resolvable:$true] %s367
      %370 = dma.vmem_to_hbm [thread:$0]  %s366, 64, %s368, [#allocation5]
    $region29: #{tpu_custom_call.1} parent=1 // pred_fallthru
      _
    // Predicated region
    $region30: #{tpu_custom_call.1} parent=1 // pred_check
      _
    $region31: #{tpu_custom_call.1} parent=1 // pred_check_branch
      %372 = sbr.rel (0) target = $region33
    $region32: #{tpu_custom_call.1} parent=1 // pred_region
      %374 = dma.done [#allocation5], 64
    $region33: #{tpu_custom_call.1} parent=1 // pred_fallthru
      _
    %375 = vsyncpa [#allocation4], 1
    %376 = vsyncpa [#allocation5], 1

</llo_original>
